<compile_context>
chip_gen: v7x
topology: tpu7x:2x2x1
jax: 0.10.0
libtpu: 0.0.40
codegen_flags: <defaults>
</compile_context>

<pallas_src>
import math
import functools

import jax
import jax.numpy as jnp
from jax.experimental import pallas as pl
from jax.experimental.pallas import tpu as pltpu


def _gcn_kernel(a_ref, x_ref, w_ref, b_ref, o_ref, *, batch_tile, d, u_pad, a_first):
    """One grid step = `batch_tile` batches, all N nodes.

    a_ref: (N, N)                   bf16  adjacency (constant block, VMEM-resident)
    x_ref: (N, batch_tile*D)        bf16  node-major features, batch folded into lanes
    w_ref: (D, U_pad)               bf16  lane-padded weight (constant block)
    b_ref: (1, U_pad)               f32   lane-padded bias   (constant block)
    o_ref: (N, batch_tile*U_pad)    bf16  node-major output, batch folded into lanes
    """
    n = a_ref.shape[0]
    bias_row = b_ref[...]                                        # (1, U_pad) f32

    if a_first:
        # U_pad >= D: (A @ x) @ W.
        # Adjacency step: ONE wide bf16 MXU matmul over batch_tile*D lanes.
        y = jnp.dot(a_ref[...], x_ref[...],
                    preferred_element_type=jnp.float32)          # (N, bt*D) f32
        # Small per-batch W matmuls on lane slices of the f32 intermediate
        # (no bf16 recast of the intermediate; second matmul stays f32).
        w = w_ref[...].astype(jnp.float32)                       # hoisted once
        bias2d = jnp.broadcast_to(bias_row, (n, u_pad))          # hoisted out of loop
        for b in range(batch_tile):
            blk = jnp.dot(y[:, b * d:(b + 1) * d], w,
                          preferred_element_type=jnp.float32)    # (N, U_pad) f32
            o_ref[:, b * u_pad:(b + 1) * u_pad] = (blk + bias2d).astype(o_ref.dtype)
    else:
        # U_pad < D: A @ (x @ W).
        # Per-batch bf16 projection shrinks lanes first, then the adjacency step
        # is ONE wide matmul over batch_tile*U_pad lanes (f32, no recast).
        x = x_ref[...]
        w = w_ref[...]
        xw = jnp.concatenate(
            [jnp.dot(x[:, b * d:(b + 1) * d], w,
                     preferred_element_type=jnp.float32)
             for b in range(batch_tile)], axis=1)                # (N, bt*U_pad) f32
        out = jnp.dot(a_ref[...].astype(jnp.float32), xw,
                      preferred_element_type=jnp.float32)
        bias_full = jnp.concatenate([bias_row] * batch_tile, axis=1)  # (1, bt*U_pad)
        o_ref[...] = (out + bias_full).astype(o_ref.dtype)


def _round_up(x, m):
    return (x + m - 1) // m * m


@functools.partial(jax.jit, static_argnames=("use_bias", "batch_tile"))
def graph_convolution(features, A, weight, bias=None, *, use_bias=True,
                      batch_tile=None):
    """Pallas implementation of GraphConvolution.forward.

    features: (B, C, N, T) [4D conv-feature path] or (B, N, D) [3D path]
    A:        (N, N) adjacency
    weight:   (D, U) with D = C*T (4D path) or D = features.shape[-1]
    bias:     (U,) or None
    returns:  (B, N, U) float32
    """
    # Cast to bf16 BEFORE the relayout (halves transpose HBM traffic), and fold
    # batch into the LANE axis (node-major) so the adjacency matmul is one wide dot.
    if features.ndim > 3:
        B, C, N, T = features.shape
        D = C * T
        x_nm = jnp.transpose(features.astype(jnp.bfloat16),
                             (2, 0, 1, 3)).reshape(N, B * D)     # x_nm[n, b*D+d]
    else:
        B, N, D = features.shape
        x_nm = jnp.transpose(features.astype(jnp.bfloat16),
                             (1, 0, 2)).reshape(N, B * D)

    U = weight.shape[1]
    U_pad = _round_up(U, 128)                                    # lane-dense output axis

    # Lane-pad weight (built directly in bf16) and bias (f32); zeros don't change math.
    w_p = jnp.zeros((D, U_pad), jnp.bfloat16).at[:, :U].set(weight.astype(jnp.bfloat16))
    if use_bias and bias is not None:
        b_p = jnp.zeros((1, U_pad), jnp.float32).at[:, :U].set(
            bias.astype(jnp.float32).reshape(1, U))
    else:
        b_p = jnp.zeros((1, U_pad), jnp.float32)

    a_bf = A.astype(jnp.bfloat16)

    # Grid over batch tiles; A / W / bias use constant block indices (stay resident).
    # Tiles are independent -> "parallel" (two-TensorCore sharding on v7x).
    if batch_tile is None:
        batch_tile = B            # single step at toy sizes; shrink for large B*D
    assert B % batch_tile == 0
    grid = (B // batch_tile,)

    a_first = U_pad >= D          # choose matmul association from the PADDED sizes

    kernel = functools.partial(_gcn_kernel, batch_tile=batch_tile, d=D,
                               u_pad=U_pad, a_first=a_first)

    out_nm = pl.pallas_call(
        kernel,
        out_shape=jax.ShapeDtypeStruct((N, B * U_pad), jnp.bfloat16),
        grid_spec=pltpu.PrefetchScalarGridSpec(
            num_scalar_prefetch=0,
            grid=grid,
            in_specs=[
                pl.BlockSpec((N, N), lambda i: (0, 0)),                 # A (resident)
                pl.BlockSpec((N, batch_tile * D), lambda i: (0, i)),    # x batch tile
                pl.BlockSpec((D, U_pad), lambda i: (0, 0)),             # weight (resident)
                pl.BlockSpec((1, U_pad), lambda i: (0, 0)),             # bias (resident)
            ],
            out_specs=pl.BlockSpec((N, batch_tile * U_pad), lambda i: (0, i)),
        ),
        compiler_params=pltpu.CompilerParams(
            dimension_semantics=("parallel",)),
    )(a_bf, x_nm, w_p, b_p)

    # Un-fold batch from lanes, drop lane padding, cast to the module's f32 output.
    # (Single fused pass under jit; kernel stores were bf16 -> half the bytes.)
    out = jnp.transpose(out_nm.reshape(N, B, U_pad), (1, 0, 2))[:, :, :U]
    return out.astype(jnp.float32)


if __name__ == "__main__":
    # Small shapes consistent with the module's 4D (conv-feature) path.
    B, C, N, T = 2, 4, 16, 16          # features: (B, C, N, T)
    input_dim = C * T                  # 64
    units = 32

    key = jax.random.PRNGKey(0)
    k_feat, k_A, k_w, k_b = jax.random.split(key, 4)

    features = jax.random.normal(k_feat, (B, C, N, T), dtype=jnp.float32)
    A = jax.random.uniform(k_A, (N, N), dtype=jnp.float32)

    # Parameter init mirroring reset_parameters(): stdv = 1/sqrt(units), uniform(-stdv, stdv)
    stdv = 1.0 / math.sqrt(units)
    weight = jax.random.uniform(k_w, (input_dim, units), dtype=jnp.float32,
                                minval=-stdv, maxval=stdv)
    bias = jax.random.uniform(k_b, (units,), dtype=jnp.float32,
                              minval=-stdv, maxval=stdv)

    out = graph_convolution(features, A, weight, bias, use_bias=True)
    out = jax.block_until_ready(out)

    # Pure-JAX f32 reference (same math as the torch forward).
    x_ref = jnp.transpose(features, (0, 2, 1, 3)).reshape(B, N, input_dim)
    ref = jnp.matmul(jnp.matmul(A, x_ref), weight) + bias
    assert out.shape == (B, N, units)
    # bf16 MXU inputs / bf16 output stores (f32 accumulation) -> loose tolerance vs pure f32.
    assert jnp.allclose(out, ref, atol=5e-2, rtol=5e-2), \
        float(jnp.max(jnp.abs(out - ref)))

    print("KERNEL_OK")
</pallas_src>

<mosaic_0001>
module attributes {stable_mosaic.version = 11 : i64} {
  func.func @_gcn_kernel(%arg0: i32, %arg1: memref<16x16xbf16, #tpu.memory_space<vmem>>, %arg2: memref<16x128xbf16, #tpu.memory_space<vmem>>, %arg3: memref<64x128xbf16, #tpu.memory_space<vmem>>, %arg4: memref<1x128xf32, #tpu.memory_space<vmem>>, %arg5: memref<16x256xbf16, #tpu.memory_space<vmem>>) attributes {dimension_semantics = [#tpu.dimension_semantics<parallel>], iteration_bounds = array<i64: 1>, scalar_prefetch = 0 : i64, scratch_operands = 0 : i64, tpu.core_type = #tpu.core_type<tc>, window_params = [{pipeline_mode = #tpu.pipeline_mode<synchronous>, transform_indices = @transform_0, window_bounds = array<i64: 16, 16>}, {transform_indices = @transform_1, window_bounds = array<i64: 16, 128>}, {pipeline_mode = #tpu.pipeline_mode<synchronous>, transform_indices = @transform_2, window_bounds = array<i64: 64, 128>}, {pipeline_mode = #tpu.pipeline_mode<synchronous>, transform_indices = @transform_3, window_bounds = array<i64: 1, 128>}, {transform_indices = @transform_4, window_bounds = array<i64: 16, 256>}]} {
    %c0 = arith.constant 0 : index
    %c0_0 = arith.constant 0 : index
    %0 = vector.load %arg4[%c0, %c0_0] : memref<1x128xf32, #tpu.memory_space<vmem>>, vector<1x128xf32>
    %c0_1 = arith.constant 0 : index
    %c0_2 = arith.constant 0 : index
    %1 = vector.load %arg1[%c0_1, %c0_2] : memref<16x16xbf16, #tpu.memory_space<vmem>>, vector<16x16xbf16>
    %c0_3 = arith.constant 0 : index
    %c0_4 = arith.constant 0 : index
    %2 = vector.load %arg2[%c0_3, %c0_4] : memref<16x128xbf16, #tpu.memory_space<vmem>>, vector<16x128xbf16>
    %cst = arith.constant dense<0.000000e+00> : vector<16x128xf32>
    %3 = tpu.matmul %1, %2, %cst {dimension_numbers = #tpu.dot_dimension_numbers<[1], [0], [0], [1], [0, 0, 1, 1], [], []>} : vector<16x16xbf16>, vector<16x128xbf16>, vector<16x128xf32> -> vector<16x128xf32>
    %c0_5 = arith.constant 0 : index
    %c0_6 = arith.constant 0 : index
    %4 = vector.load %arg3[%c0_5, %c0_6] : memref<64x128xbf16, #tpu.memory_space<vmem>>, vector<64x128xbf16>
    %5 = arith.extf %4 : vector<64x128xbf16> to vector<64x128xf32>
    %6 = vector.shape_cast %0 : vector<1x128xf32> to vector<1x128xf32>
    %7 = vector.broadcast %6 : vector<1x128xf32> to vector<16x128xf32>
    %8 = vector.extract_strided_slice %3 {offsets = [0, 0], sizes = [16, 64], strides = [1, 1]} : vector<16x128xf32> to vector<16x64xf32>
    %cst_7 = arith.constant dense<0.000000e+00> : vector<16x128xf32>
    %9 = tpu.matmul %8, %5, %cst_7 {dimension_numbers = #tpu.dot_dimension_numbers<[1], [0], [0], [1], [0, 0, 1, 1], [], []>} : vector<16x64xf32>, vector<64x128xf32>, vector<16x128xf32> -> vector<16x128xf32>
    %10 = arith.addf %9, %7 : vector<16x128xf32>
    %11 = arith.truncf %10 : vector<16x128xf32> to vector<16x128xbf16>
    %c0_8 = arith.constant 0 : index
    %c0_9 = arith.constant 0 : index
    %12 = vector.load %arg5[%c0_8, %c0_9] : memref<16x256xbf16, #tpu.memory_space<vmem>>, vector<16x128xbf16>
    tpu.vector_store %arg5[%c0_8, %c0_9], %11 {strides = array<i32>} : memref<16x256xbf16, #tpu.memory_space<vmem>>, vector<16x128xbf16>,
    %13 = vector.extract_strided_slice %3 {offsets = [0, 64], sizes = [16, 64], strides = [1, 1]} : vector<16x128xf32> to vector<16x64xf32>
    %cst_10 = arith.constant dense<0.000000e+00> : vector<16x128xf32>
    %14 = tpu.matmul %13, %5, %cst_10 {dimension_numbers = #tpu.dot_dimension_numbers<[1], [0], [0], [1], [0, 0, 1, 1], [], []>} : vector<16x64xf32>, vector<64x128xf32>, vector<16x128xf32> -> vector<16x128xf32>
    %15 = arith.addf %14, %7 : vector<16x128xf32>
    %16 = arith.truncf %15 : vector<16x128xf32> to vector<16x128xbf16>
    %c0_11 = arith.constant 0 : index
    %c128 = arith.constant 128 : index
    %17 = vector.load %arg5[%c0_11, %c128] : memref<16x256xbf16, #tpu.memory_space<vmem>>, vector<16x128xbf16>
    tpu.vector_store %arg5[%c0_11, %c128], %16 {strides = array<i32>} : memref<16x256xbf16, #tpu.memory_space<vmem>>, vector<16x128xbf16>,
    return
  }
  func.func @transform_0(%arg0: i32) -> (i32, i32) {
    %c0_i32 = arith.constant 0 : i32
    %c0_i32_0 = arith.constant 0 : i32
    %c0_i32_1 = arith.constant 0 : i32
    return %c0_i32, %c0_i32_0 : i32, i32
  }
  func.func @transform_1(%arg0: i32) -> (i32, i32) {
    %c0_i32 = arith.constant 0 : i32
    %c0_i32_0 = arith.constant 0 : i32
    return %c0_i32, %arg0 : i32, i32
  }
  func.func @transform_2(%arg0: i32) -> (i32, i32) {
    %c0_i32 = arith.constant 0 : i32
    %c0_i32_0 = arith.constant 0 : i32
    %c0_i32_1 = arith.constant 0 : i32
    return %c0_i32, %c0_i32_0 : i32, i32
  }
  func.func @transform_3(%arg0: i32) -> (i32, i32) {
    %c0_i32 = arith.constant 0 : i32
    %c0_i32_0 = arith.constant 0 : i32
    %c0_i32_1 = arith.constant 0 : i32
    return %c0_i32, %c0_i32_0 : i32, i32
  }
  func.func @transform_4(%arg0: i32) -> (i32, i32) {
    %c0_i32 = arith.constant 0 : i32
    %c0_i32_0 = arith.constant 0 : i32
    return %c0_i32, %arg0 : i32, i32
  }
}

</mosaic_0001>

<llo_original>
// kernel: graph_convolution.1
$region0: #{graph_convolution.1}
  #allocation0 [shape = 'u32[]', space=smem, size = 0x4, offset = 0x4, fixed_abs, tag = 'smem constant byte address 0x4 - core index']
  #allocation1 [shape = 'u32[144,128]{1,0:T(1,128)}', space=vmem, size = 0x12000, scoped, tag = 'internal scratch']
  %s0 = inlined_call_operand.vmem [shape: bf16[16,16], index: 0, kind: input, shape index: {}]
  %s1 = inlined_call_operand.vmem [shape: bf16[16,128], index: 1, kind: input, shape index: {}]
  %s2 = inlined_call_operand.vmem [shape: bf16[64,128], index: 2, kind: input, shape index: {}]
  %s3 = inlined_call_operand.vmem [shape: f32[1,128], index: 3, kind: input, shape index: {}]
  %s4 = inlined_call_operand.vmem [shape: bf16[16,256], index: 4, kind: output, shape index: {}]
  %s5 = sld [smem:[#allocation0]]
  $region26: #{graph_convolution.1} parent=0
    _
  %s7 = ssub.s32 1, %s5
  %s8 = scalar_select 0, %s7, %s5
  // Predicated region
  $region2: #{graph_convolution.1} parent=0 // pred_check
    _
  $region3: #{graph_convolution.1} parent=0 // pred_check_branch
    %10 = sbr.rel (0) target = $region5
  $region4: #{graph_convolution.1} parent=0 // pred_region
    _
  $region5: #{graph_convolution.1} parent=0 // pred_fallthru
    _
  // Predicated region
  $region6: #{graph_convolution.1} parent=0 // pred_check
    _
  $region7: #{graph_convolution.1} parent=0 // pred_check_branch
    %12 = sbr.rel (0) target = $region9
  $region8: #{graph_convolution.1} parent=0 // pred_region
    _
  $region9: #{graph_convolution.1} parent=0 // pred_fallthru
    _
  // Predicated region
  $region10: #{graph_convolution.1} parent=0 // pred_check
    _
  $region11: #{graph_convolution.1} parent=0 // pred_check_branch
    %14 = sbr.rel (0) target = $region13
  $region12: #{graph_convolution.1} parent=0 // pred_region
    _
  $region13: #{graph_convolution.1} parent=0 // pred_fallthru
    _
  // Predicated region
  $region14: #{graph_convolution.1} parent=0 // pred_check
    _
  $region15: #{graph_convolution.1} parent=0 // pred_check_branch
    %16 = sbr.rel (0) target = $region17
  $region16: #{graph_convolution.1} parent=0 // pred_region
    _
  $region17: #{graph_convolution.1} parent=0 // pred_fallthru
    _
  %v18 = vld [vmem:[%s3] sm:$0x1]
  %v19 = vld [vmem:[%s0] sm:$0xf]
  %v20 = vld [vmem:[%s0 + $0x4] sm:$0xf]
  %v21 = vld [vmem:[%s1] sm:$0xf]
  %v22 = vld [vmem:[%s1 + $0x4] sm:$0xf]
  %v25 = vunpack.c.l.b16 %v19
  %v26 = vunpack.c.l.b16 %v20
  %v27 = vpack.c.b16 %v26, %v25
  %v30 = vunpack.c.l.b16 %v21
  %v31 = vunpack.c.l.b16 %v22
  %v32 = vpack.c.b16 %v31, %v30
  %vm34 = vcmask 130048
  %v36 = vsel %vm34, %v27, 0
  %38 = vmatprep.subr.bf16.mxu0 0
  %39 = vmatpush1.bf16.msra.mxu0 %v32
  %40 = vmatprep.subr.bf16.mxu0 0
  %41 = vmatpush1.bf16.msra.mxu0 0
  %42 = vmatprep.subr.bf16.mxu0 0
  %43 = vmatpush1.bf16.msra.mxu0 0
  %44 = vmatprep.subr.bf16.mxu0 0
  %45 = vmatpush1.bf16.msra.mxu0 0
  %46 = vmatprep.subr.bf16.mxu0 0
  %47 = vmatpush1.bf16.msra.mxu0 0
  %48 = vmatprep.subr.bf16.mxu0 0
  %49 = vmatpush1.bf16.msra.mxu0 0
  %50 = vmatprep.subr.bf16.mxu0 0
  %51 = vmatpush1.bf16.msra.mxu0 0
  %52 = vmatprep.subr.bf16.mxu0 0
  %53 = vmatpush1.bf16.msra.mxu0 0
  %54 = vmatprep.subr.bf16.mxu0 0
  %55 = vmatpush1.bf16.msra.mxu0 0
  %56 = vmatprep.subr.bf16.mxu0 0
  %57 = vmatpush1.bf16.msra.mxu0 0
  %58 = vmatprep.subr.bf16.mxu0 0
  %59 = vmatpush1.bf16.msra.mxu0 0
  %60 = vmatprep.subr.bf16.mxu0 0
  %61 = vmatpush1.bf16.msra.mxu0 0
  %62 = vmatprep.subr.bf16.mxu0 0
  %63 = vmatpush1.bf16.msra.mxu0 0
  %64 = vmatprep.subr.bf16.mxu0 0
  %65 = vmatpush1.bf16.msra.mxu0 0
  %66 = vmatprep.subr.bf16.mxu0 0
  %67 = vmatpush1.bf16.msra.mxu0 0
  %68 = vmatprep.subr.bf16.mxu0 0
  %69 = vmatpush1.bf16.msra.mxu0 0
  %70 = vmatprep.mubr.bf16.mxu0 0
  %71 = vmatmul.mubr.bf16.gmra.mrb[0].mxu0 %v36
  %v72 = vpop.f32.mrb[0].mxu0
  %v73 = vadd.f32 0.0, %v72
  %v74 = vpop.f32.mrb[0].mxu0
  %v75 = vpop.f32.mrb[0].mxu0
  %v76 = vadd.f32 0.0, %v75
  %v77 = vpop.f32.mrb[0].mxu0
  %78 = vdwg.mxu0
  %v79 = vld [vmem:[%s2] sm:$0xf]
  %v80 = vld [vmem:[%s2 + $0x4] sm:$0xf]
  %v81 = vld [vmem:[%s2 + $0x8] sm:$0xf]
  %v82 = vld [vmem:[%s2 + $0xc] sm:$0xf]
  %v83 = vld [vmem:[%s2 + $0x10] sm:$0xf]
  %v84 = vld [vmem:[%s2 + $0x14] sm:$0xf]
  %v85 = vld [vmem:[%s2 + $0x18] sm:$0xf]
  %v86 = vld [vmem:[%s2 + $0x1c] sm:$0xf]
  %v87 = vunpack.c.l.bf16 %v79
  %v88 = vunpack.c.l.bf16 %v80
  %v89 = vunpack.c.l.bf16 %v81
  %v90 = vunpack.c.l.bf16 %v82
  %v91 = vunpack.c.l.bf16 %v83
  %v92 = vunpack.c.l.bf16 %v84
  %v93 = vunpack.c.l.bf16 %v85
  %v94 = vunpack.c.l.bf16 %v86
  %v96 = vlaneseq
  %v97 = vshrl.u32 %v96, 7
  %v98 = vsub.s32 0, %v97
  %v99 = vrot.slane %v18, %v98
  %vm101 = vcmask 523264
  %v103 = vsel %vm101, %v73, 0
  %v106 = vsel %vm101, %v76, 0
  %108 = vmatprep.subr.mxu0 0.0
  %109 = vmatpush1.msra.mxu0 %v87
  %110 = vmatprep.subr.mxu0 0.0
  %111 = vmatpush1.msra.mxu0 %v88
  %112 = vmatprep.subr.mxu0 0.0
  %113 = vmatpush1.msra.mxu0 %v89
  %114 = vmatprep.subr.mxu0 0.0
  %115 = vmatpush1.msra.mxu0 %v90
  %116 = vmatprep.subr.mxu0 0.0
  %117 = vmatpush1.msra.mxu0 %v91
  %118 = vmatprep.subr.mxu0 0.0
  %119 = vmatpush1.msra.mxu0 %v92
  %120 = vmatprep.subr.mxu0 0.0
  %121 = vmatpush1.msra.mxu0 %v93
  %122 = vmatprep.subr.mxu0 0.0
  %123 = vmatpush1.msra.mxu0 %v94
  %124 = vmatprep.subr.mxu0 0.0
  %125 = vmatpush1.msra.mxu0 0.0
  %126 = vmatprep.subr.mxu0 0.0
  %127 = vmatpush1.msra.mxu0 0.0
  %128 = vmatprep.subr.mxu0 0.0
  %129 = vmatpush1.msra.mxu0 0.0
  %130 = vmatprep.subr.mxu0 0.0
  %131 = vmatpush1.msra.mxu0 0.0
  %132 = vmatprep.subr.mxu0 0.0
  %133 = vmatpush1.msra.mxu0 0.0
  %134 = vmatprep.subr.mxu0 0.0
  %135 = vmatpush1.msra.mxu0 0.0
  %136 = vmatprep.subr.mxu0 0.0
  %137 = vmatpush1.msra.mxu0 0.0
  %138 = vmatprep.subr.mxu0 0.0
  %139 = vmatpush1.msra.mxu0 0.0
  %140 = vmatprep.subr.mxu0 0.0
  %141 = vmatpush1.msra.mxu0 0.0
  %142 = vmatprep.subr.mxu0 0.0
  %143 = vmatpush1.msra.mxu0 0.0
  %144 = vmatprep.subr.mxu0 0.0
  %145 = vmatpush1.msra.mxu0 0.0
  %146 = vmatprep.subr.mxu0 0.0
  %147 = vmatpush1.msra.mxu0 0.0
  %148 = vmatprep.subr.mxu0 0.0
  %149 = vmatpush1.msra.mxu0 0.0
  %150 = vmatprep.subr.mxu0 0.0
  %151 = vmatpush1.msra.mxu0 0.0
  %152 = vmatprep.subr.mxu0 0.0
  %153 = vmatpush1.msra.mxu0 0.0
  %154 = vmatprep.subr.mxu0 0.0
  %155 = vmatpush1.msra.mxu0 0.0
  %156 = vmatprep.subr.mxu0 0.0
  %157 = vmatpush1.msra.mxu0 0.0
  %158 = vmatprep.subr.mxu0 0.0
  %159 = vmatpush1.msra.mxu0 0.0
  %160 = vmatprep.subr.mxu0 0.0
  %161 = vmatpush1.msra.mxu0 0.0
  %162 = vmatprep.subr.mxu0 0.0
  %163 = vmatpush1.msra.mxu0 0.0
  %164 = vmatprep.subr.mxu0 0.0
  %165 = vmatpush1.msra.mxu0 0.0
  %166 = vmatprep.subr.mxu0 0.0
  %167 = vmatpush1.msra.mxu0 0.0
  %168 = vmatprep.subr.mxu0 0.0
  %169 = vmatpush1.msra.mxu0 0.0
  %170 = vmatprep.subr.mxu0 0.0
  %171 = vmatpush1.msra.mxu0 0.0
  %172 = vmatprep.mubr.f32.mxu0 0.0
  %173 = vmatmul.mubr.f32.gmra.mrb[0].mxu0 %v103
  %v174 = vpop.f32.mrb[0].mxu0
  %v175 = vadd.f32 %v99, %v174
  %v176 = vpop.f32.mrb[0].mxu0
  %177 = vmatprep.mubr.f32.mxu0 0.0
  %178 = vmatmul.mubr.f32.gmra.mrb[0].mxu0 %v106
  %v179 = vpop.f32.mrb[0].mxu0
  %v180 = vadd.f32 %v99, %v179
  %v181 = vpop.f32.mrb[0].mxu0
  %182 = vdwg.mxu0
  %v183 = vpack.c.bf16 %v180, %v175
  %v185 = vunpack.c.l.b16 %v183
  %v186 = vunpack.c.h.b16 %v183
  %v187 = vpack.c.b16 %v185, %v185
  %v188 = vpack.c.b16 %v186, %v186
  %191 = vst [vmem:[%s4] sm:$0xf] %v187
  %192 = vst [vmem:[%s4 + $0x8] sm:$0xf] %v188
  %193 = vrot.lane.b32.xlu0 %v73, 64
  %v194 = vpop.permute.xlu0 %193
  %195 = vrot.lane.b32.xlu0 %v76, 64
  %v196 = vpop.permute.xlu0 %195
  %v197 = vsel %vm101, %v194, 0
  %v199 = vsel %vm101, %v196, 0
  %201 = vmatprep.subr.mxu0 0.0
  %202 = vmatpush1.msra.mxu0 %v87
  %203 = vmatprep.subr.mxu0 0.0
  %204 = vmatpush1.msra.mxu0 %v88
  %205 = vmatprep.subr.mxu0 0.0
  %206 = vmatpush1.msra.mxu0 %v89
  %207 = vmatprep.subr.mxu0 0.0
  %208 = vmatpush1.msra.mxu0 %v90
  %209 = vmatprep.subr.mxu0 0.0
  %210 = vmatpush1.msra.mxu0 %v91
  %211 = vmatprep.subr.mxu0 0.0
  %212 = vmatpush1.msra.mxu0 %v92
  %213 = vmatprep.subr.mxu0 0.0
  %214 = vmatpush1.msra.mxu0 %v93
  %215 = vmatprep.subr.mxu0 0.0
  %216 = vmatpush1.msra.mxu0 %v94
  %217 = vmatprep.subr.mxu0 0.0
  %218 = vmatpush1.msra.mxu0 0.0
  %219 = vmatprep.subr.mxu0 0.0
  %220 = vmatpush1.msra.mxu0 0.0
  %221 = vmatprep.subr.mxu0 0.0
  %222 = vmatpush1.msra.mxu0 0.0
  %223 = vmatprep.subr.mxu0 0.0
  %224 = vmatpush1.msra.mxu0 0.0
  %225 = vmatprep.subr.mxu0 0.0
  %226 = vmatpush1.msra.mxu0 0.0
  %227 = vmatprep.subr.mxu0 0.0
  %228 = vmatpush1.msra.mxu0 0.0
  %229 = vmatprep.subr.mxu0 0.0
  %230 = vmatpush1.msra.mxu0 0.0
  %231 = vmatprep.subr.mxu0 0.0
  %232 = vmatpush1.msra.mxu0 0.0
  %233 = vmatprep.subr.mxu0 0.0
  %234 = vmatpush1.msra.mxu0 0.0
  %235 = vmatprep.subr.mxu0 0.0
  %236 = vmatpush1.msra.mxu0 0.0
  %237 = vmatprep.subr.mxu0 0.0
  %238 = vmatpush1.msra.mxu0 0.0
  %239 = vmatprep.subr.mxu0 0.0
  %240 = vmatpush1.msra.mxu0 0.0
  %241 = vmatprep.subr.mxu0 0.0
  %242 = vmatpush1.msra.mxu0 0.0
  %243 = vmatprep.subr.mxu0 0.0
  %244 = vmatpush1.msra.mxu0 0.0
  %245 = vmatprep.subr.mxu0 0.0
  %246 = vmatpush1.msra.mxu0 0.0
  %247 = vmatprep.subr.mxu0 0.0
  %248 = vmatpush1.msra.mxu0 0.0
  %249 = vmatprep.subr.mxu0 0.0
  %250 = vmatpush1.msra.mxu0 0.0
  %251 = vmatprep.subr.mxu0 0.0
  %252 = vmatpush1.msra.mxu0 0.0
  %253 = vmatprep.subr.mxu0 0.0
  %254 = vmatpush1.msra.mxu0 0.0
  %255 = vmatprep.subr.mxu0 0.0
  %256 = vmatpush1.msra.mxu0 0.0
  %257 = vmatprep.subr.mxu0 0.0
  %258 = vmatpush1.msra.mxu0 0.0
  %259 = vmatprep.subr.mxu0 0.0
  %260 = vmatpush1.msra.mxu0 0.0
  %261 = vmatprep.subr.mxu0 0.0
  %262 = vmatpush1.msra.mxu0 0.0
  %263 = vmatprep.subr.mxu0 0.0
  %264 = vmatpush1.msra.mxu0 0.0
  %265 = vmatprep.mubr.f32.mxu0 0.0
  %266 = vmatmul.mubr.f32.gmra.mrb[0].mxu0 %v197
  %v267 = vpop.f32.mrb[0].mxu0
  %v268 = vadd.f32 %v99, %v267
  %v269 = vpop.f32.mrb[0].mxu0
  %270 = vmatprep.mubr.f32.mxu0 0.0
  %271 = vmatmul.mubr.f32.gmra.mrb[0].mxu0 %v199
  %v272 = vpop.f32.mrb[0].mxu0
  %v273 = vadd.f32 %v99, %v272
  %v274 = vpop.f32.mrb[0].mxu0
  %275 = vdwg.mxu0
  %v276 = vpack.c.bf16 %v273, %v268
  %v278 = vunpack.c.l.b16 %v276
  %v279 = vunpack.c.h.b16 %v276
  %v280 = vpack.c.b16 %v278, %v278
  %v281 = vpack.c.b16 %v279, %v279
  %284 = vst [vmem:[%s4 + $0x4] sm:$0xf] %v280
  %285 = vst [vmem:[%s4 + $0xc] sm:$0xf] %v281
  // Predicated region
  $region18: #{graph_convolution.1} parent=0 // pred_check
    _
  $region19: #{graph_convolution.1} parent=0 // pred_check_branch
    %287 = sbr.rel (0) target = $region21
  $region20: #{graph_convolution.1} parent=0 // pred_region
    _
  $region21: #{graph_convolution.1} parent=0 // pred_fallthru
    _
  // Predicated region
  $region22: #{graph_convolution.1} parent=0 // pred_check
    _
  $region23: #{graph_convolution.1} parent=0 // pred_check_branch
    %289 = sbr.rel (0) target = $region25
  $region24: #{graph_convolution.1} parent=0 // pred_region
    _
  $region25: #{graph_convolution.1} parent=0 // pred_fallthru
    _

</llo_original>
